<compile_context>
chip_gen: v6e
topology: v6e:2x2x1
jax: 0.10.0
libtpu: 0.0.40
codegen_flags: <defaults>
</compile_context>

<pallas_src>
import functools

import jax
import jax.numpy as jnp
from jax.experimental import pallas as pl
from jax.experimental.pallas import tpu as pltpu

# Synthetic "bag of characters" feature size (dataset-derived in the original).
BOC_SIZE = 512
LAYER_SIZES = [BOC_SIZE, 256, 128, 64, 32, 2]   # true (unpadded) layer widths
HIDDEN_PAD = 128                                # pad 64/32-wide hiddens to 128
OUT_TRUE = LAYER_SIZES[-1]                      # 2 logits
OUT_PAD_T = 8                                   # padded logit rows (transposed out)
MAX_TILE_B = 512                                # batch tile upper bound


def _round_up(n: int, m: int) -> int:
    return ((n + m - 1) // m) * m


def mlp_kernel(x_ref,
               w1_ref, b1_ref,
               w2_ref, b2_ref,
               w3_ref, b3_ref,
               w4_ref, b4_ref,
               w5t_ref, b5t_ref,
               o_ref):
    """Fused 5-layer MLP forward for one (TILE_B, BOC_SIZE) batch tile."""

    def dense_relu(h, w_ref, b_ref):
        # bf16 x bf16 matmul, f32 accumulate on the MXU.
        acc = jnp.dot(h, w_ref[...], preferred_element_type=jnp.float32)
        # bias-add + ReLU in f32 (safe on all TPU generations), back to bf16.
        return jnp.maximum(acc + b_ref[...], 0.0).astype(jnp.bfloat16)

    # In-kernel f32 -> bf16 cast: avoids a separate XLA pass over x in HBM.
    h = x_ref[...].astype(jnp.bfloat16)          # (TILE_B, 512)
    h = dense_relu(h, w1_ref, b1_ref)            # fc1 + relu -> (TILE_B, 256)
    h = dense_relu(h, w2_ref, b2_ref)            # fc2 + relu -> (TILE_B, 128)
    h = dense_relu(h, w3_ref, b3_ref)            # fc3 + relu -> (TILE_B, 128) [64 padded]
    h = dense_relu(h, w4_ref, b4_ref)            # fc4 + relu -> (TILE_B, 128) [32 padded]
    # fc5 (no relu), computed transposed on the MXU (A @ B^T pattern):
    #   (OUT_PAD_T, 128) x (TILE_B, 128)^T -> (OUT_PAD_T, TILE_B)
    out_t = jax.lax.dot_general(
        w5t_ref[...], h,
        dimension_numbers=(((1,), (1,)), ((), ())),
        preferred_element_type=jnp.float32)
    o_ref[...] = (out_t + b5t_ref[...]).astype(o_ref.dtype)


def init_params(key):
    """PyTorch-style uniform(-1/sqrt(fan_in), 1/sqrt(fan_in)) init.

    Weights are stored transposed relative to nn.Linear, i.e. (in, out), in
    bf16; biases in f32.  Hidden dims 64/32 are zero-padded to 128.  The last
    layer is stored pre-transposed as (OUT_PAD_T, 128) with zero-padded rows.
    Zero padding keeps all padded lanes exactly 0 through the network.
    """
    raw = []
    for fan_in, fan_out in zip(LAYER_SIZES[:-1], LAYER_SIZES[1:]):
        key, kw, kb = jax.random.split(key, 3)
        bound = 1.0 / float(fan_in) ** 0.5
        w = jax.random.uniform(kw, (fan_in, fan_out), jnp.float32, -bound, bound)
        b = jax.random.uniform(kb, (1, fan_out), jnp.float32, -bound, bound)
        raw.append((w, b))

    def pad_to(a, rows, cols):
        return jnp.pad(a, ((0, rows - a.shape[0]), (0, cols - a.shape[1])))

    (w1, b1), (w2, b2), (w3, b3), (w4, b4), (w5, b5) = raw
    # fc3: 128 -> 64  ==> pad output cols to 128.
    w3 = pad_to(w3, 128, HIDDEN_PAD); b3 = pad_to(b3, 1, HIDDEN_PAD)
    # fc4: 64 -> 32   ==> pad input rows and output cols to 128.
    w4 = pad_to(w4, HIDDEN_PAD, HIDDEN_PAD); b4 = pad_to(b4, 1, HIDDEN_PAD)
    # fc5: 32 -> 2    ==> pad input rows to 128, transpose, pad logit rows to 8.
    w5t = pad_to(pad_to(w5, HIDDEN_PAD, OUT_TRUE).T, OUT_PAD_T, HIDDEN_PAD)  # (8, 128)
    b5t = pad_to(b5.T, OUT_PAD_T, 1)                                         # (8, 1)

    params = [(w1, b1), (w2, b2), (w3, b3), (w4, b4), (w5t, b5t)]
    # bf16 weights (MXU-native), f32 biases (epilogue stays in f32).
    return [(w.astype(jnp.bfloat16), b.astype(jnp.float32)) for w, b in params]


def _choose_tiling(batch):
    """Pick (tile_b, padded_batch). Multiple of 16 (bf16 sublane packing);
    for batch >= 256 force >= 2 grid steps with a 128-multiple tile so the
    transposed output store stays lane-dense and both v7x cores get work."""
    if batch < 256:
        tile_b = _round_up(max(batch, 1), 16)
        padded = tile_b                       # single grid step
    else:
        tile_b = min(MAX_TILE_B, 128 * (batch // 256))
        padded = _round_up(batch, tile_b)
    return tile_b, padded


@functools.partial(jax.jit, static_argnames=("tile_b",))
def _net_forward_padded(x_padded, flat_params, tile_b):
    padded_batch = x_padded.shape[0]
    grid = (padded_batch // tile_b,)

    # x tile marches over the batch; weights/biases use a constant index_map so
    # the pipeline keeps them VMEM-resident across grid steps (never re-DMA'd).
    x_spec = pl.BlockSpec((tile_b, BOC_SIZE), lambda i: (i, 0))
    const_spec = lambda shape: pl.BlockSpec(shape, lambda i: (0, 0))
    param_specs = [const_spec(p.shape) for p in flat_params]
    # Transposed output: (OUT_PAD_T, padded_batch), one (8, tile_b) block/step.
    out_spec = pl.BlockSpec((OUT_PAD_T, tile_b), lambda i: (0, i))

    # Advisory cost hint for XLA's scheduler (padded layer widths).
    pw = [BOC_SIZE, 256, 128, 128, 128, OUT_PAD_T]
    flops = 2 * padded_batch * sum(fi * fo for fi, fo in zip(pw[:-1], pw[1:]))
    bytes_accessed = (
        x_padded.size * 4                                     # f32 input
        + sum(int(p.size) * p.dtype.itemsize for p in flat_params)
        + OUT_PAD_T * padded_batch * 4)                       # f32 transposed out
    cost = pl.CostEstimate(flops=flops, transcendentals=0,
                           bytes_accessed=bytes_accessed)

    out_t = pl.pallas_call(
        mlp_kernel,
        out_shape=jax.ShapeDtypeStruct((OUT_PAD_T, padded_batch), jnp.float32),
        grid=grid,
        in_specs=[x_spec] + param_specs,
        out_specs=out_spec,
        compiler_params=pltpu.CompilerParams(
            dimension_semantics=("parallel",),          # megacore on v7x
            vmem_limit_bytes=32 * 1024 * 1024,          # safe on v5e/v6e/v7x
        ),
        cost_estimate=cost,
    )(x_padded, *flat_params)
    return out_t


def net_forward(x, params):
    """x: (batch, BOC_SIZE) float array -> (batch, 2) f32 logits."""
    batch = x.shape[0]
    tile_b, padded_batch = _choose_tiling(batch)

    x = x.astype(jnp.float32)                   # native dtype; cast to bf16 in-kernel
    if padded_batch != batch:
        x = jnp.pad(x, ((0, padded_batch - batch), (0, 0)))

    flat_params = tuple(t for wb in params for t in wb)
    out_t = _net_forward_padded(x, flat_params, tile_b)
    return out_t[:OUT_TRUE, :batch].T           # (batch, 2)


def net_forward_ref(x, params):
    """Pure-JAX reference with identical (bf16, padded) params."""
    h = x.astype(jnp.bfloat16)
    for w, b in params[:-1]:
        h = jnp.dot(h, w, preferred_element_type=jnp.float32) + b
        h = jnp.maximum(h, 0.0).astype(jnp.bfloat16)
    w5t, b5t = params[-1]
    out = jnp.dot(h, w5t.T, preferred_element_type=jnp.float32) + b5t.reshape(1, -1)
    return out[:, :OUT_TRUE]


if __name__ == "__main__":
    key = jax.random.PRNGKey(0)
    kx, kp = jax.random.split(key)

    batch = 8
    x = jax.random.normal(kx, (batch, BOC_SIZE), jnp.float32)
    params = init_params(kp)

    out = net_forward(x, params)
    out = jax.block_until_ready(out)

    ref = net_forward_ref(x, params)
    assert out.shape == (batch, OUT_TRUE), out.shape
    assert jnp.allclose(out, ref, atol=1e-2, rtol=1e-2), "mismatch vs reference"

    print("KERNEL_OK")
</pallas_src>

<mosaic_0001>
module attributes {stable_mosaic.version = 11 : i64} {
  func.func @mlp_kernel(%arg0: i32, %arg1: memref<16x512xf32, #tpu.memory_space<vmem>>, %arg2: memref<512x256xbf16, #tpu.memory_space<vmem>>, %arg3: memref<1x256xf32, #tpu.memory_space<vmem>>, %arg4: memref<256x128xbf16, #tpu.memory_space<vmem>>, %arg5: memref<1x128xf32, #tpu.memory_space<vmem>>, %arg6: memref<128x128xbf16, #tpu.memory_space<vmem>>, %arg7: memref<1x128xf32, #tpu.memory_space<vmem>>, %arg8: memref<128x128xbf16, #tpu.memory_space<vmem>>, %arg9: memref<1x128xf32, #tpu.memory_space<vmem>>, %arg10: memref<8x128xbf16, #tpu.memory_space<vmem>>, %arg11: memref<8x1xf32, #tpu.memory_space<vmem>>, %arg12: memref<8x16xf32, #tpu.memory_space<vmem>>) attributes {dimension_semantics = [#tpu.dimension_semantics<parallel>], iteration_bounds = array<i64: 1>, scalar_prefetch = 0 : i64, scratch_operands = 0 : i64, tpu.core_type = #tpu.core_type<tc>, window_params = [{transform_indices = @transform_0, window_bounds = array<i64: 16, 512>}, {pipeline_mode = #tpu.pipeline_mode<synchronous>, transform_indices = @transform_1, window_bounds = array<i64: 512, 256>}, {pipeline_mode = #tpu.pipeline_mode<synchronous>, transform_indices = @transform_2, window_bounds = array<i64: 1, 256>}, {pipeline_mode = #tpu.pipeline_mode<synchronous>, transform_indices = @transform_3, window_bounds = array<i64: 256, 128>}, {pipeline_mode = #tpu.pipeline_mode<synchronous>, transform_indices = @transform_4, window_bounds = array<i64: 1, 128>}, {pipeline_mode = #tpu.pipeline_mode<synchronous>, transform_indices = @transform_5, window_bounds = array<i64: 128, 128>}, {pipeline_mode = #tpu.pipeline_mode<synchronous>, transform_indices = @transform_6, window_bounds = array<i64: 1, 128>}, {pipeline_mode = #tpu.pipeline_mode<synchronous>, transform_indices = @transform_7, window_bounds = array<i64: 128, 128>}, {pipeline_mode = #tpu.pipeline_mode<synchronous>, transform_indices = @transform_8, window_bounds = array<i64: 1, 128>}, {pipeline_mode = #tpu.pipeline_mode<synchronous>, transform_indices = @transform_9, window_bounds = array<i64: 8, 128>}, {pipeline_mode = #tpu.pipeline_mode<synchronous>, transform_indices = @transform_10, window_bounds = array<i64: 8, 1>}, {transform_indices = @transform_11, window_bounds = array<i64: 8, 16>}]} {
    %c0 = arith.constant 0 : index
    %c0_0 = arith.constant 0 : index
    %0 = vector.load %arg1[%c0, %c0_0] : memref<16x512xf32, #tpu.memory_space<vmem>>, vector<16x512xf32>
    %1 = arith.truncf %0 : vector<16x512xf32> to vector<16x512xbf16>
    %c0_1 = arith.constant 0 : index
    %c0_2 = arith.constant 0 : index
    %2 = vector.load %arg2[%c0_1, %c0_2] : memref<512x256xbf16, #tpu.memory_space<vmem>>, vector<512x256xbf16>
    %cst = arith.constant dense<0.000000e+00> : vector<16x256xf32>
    %3 = tpu.matmul %1, %2, %cst {dimension_numbers = #tpu.dot_dimension_numbers<[1], [0], [0], [1], [0, 0, 1, 1], [], []>} : vector<16x512xbf16>, vector<512x256xbf16>, vector<16x256xf32> -> vector<16x256xf32>
    %c0_3 = arith.constant 0 : index
    %c0_4 = arith.constant 0 : index
    %4 = vector.load %arg3[%c0_3, %c0_4] : memref<1x256xf32, #tpu.memory_space<vmem>>, vector<1x256xf32>
    %5 = vector.broadcast %4 : vector<1x256xf32> to vector<16x256xf32>
    %6 = arith.addf %3, %5 : vector<16x256xf32>
    %cst_5 = arith.constant 0.000000e+00 : f32
    %7 = vector.broadcast %cst_5 : f32 to vector<16x256xf32>
    %8 = arith.maximumf %6, %7 : vector<16x256xf32>
    %9 = arith.truncf %8 : vector<16x256xf32> to vector<16x256xbf16>
    %c0_6 = arith.constant 0 : index
    %c0_7 = arith.constant 0 : index
    %10 = vector.load %arg4[%c0_6, %c0_7] : memref<256x128xbf16, #tpu.memory_space<vmem>>, vector<256x128xbf16>
    %cst_8 = arith.constant dense<0.000000e+00> : vector<16x128xf32>
    %11 = tpu.matmul %9, %10, %cst_8 {dimension_numbers = #tpu.dot_dimension_numbers<[1], [0], [0], [1], [0, 0, 1, 1], [], []>} : vector<16x256xbf16>, vector<256x128xbf16>, vector<16x128xf32> -> vector<16x128xf32>
    %c0_9 = arith.constant 0 : index
    %c0_10 = arith.constant 0 : index
    %12 = vector.load %arg5[%c0_9, %c0_10] : memref<1x128xf32, #tpu.memory_space<vmem>>, vector<1x128xf32>
    %13 = vector.broadcast %12 : vector<1x128xf32> to vector<16x128xf32>
    %14 = arith.addf %11, %13 : vector<16x128xf32>
    %cst_11 = arith.constant 0.000000e+00 : f32
    %15 = vector.broadcast %cst_11 : f32 to vector<16x128xf32>
    %16 = arith.maximumf %14, %15 : vector<16x128xf32>
    %17 = arith.truncf %16 : vector<16x128xf32> to vector<16x128xbf16>
    %c0_12 = arith.constant 0 : index
    %c0_13 = arith.constant 0 : index
    %18 = vector.load %arg6[%c0_12, %c0_13] : memref<128x128xbf16, #tpu.memory_space<vmem>>, vector<128x128xbf16>
    %cst_14 = arith.constant dense<0.000000e+00> : vector<16x128xf32>
    %19 = tpu.matmul %17, %18, %cst_14 {dimension_numbers = #tpu.dot_dimension_numbers<[1], [0], [0], [1], [0, 0, 1, 1], [], []>} : vector<16x128xbf16>, vector<128x128xbf16>, vector<16x128xf32> -> vector<16x128xf32>
    %c0_15 = arith.constant 0 : index
    %c0_16 = arith.constant 0 : index
    %20 = vector.load %arg7[%c0_15, %c0_16] : memref<1x128xf32, #tpu.memory_space<vmem>>, vector<1x128xf32>
    %21 = vector.broadcast %20 : vector<1x128xf32> to vector<16x128xf32>
    %22 = arith.addf %19, %21 : vector<16x128xf32>
    %cst_17 = arith.constant 0.000000e+00 : f32
    %23 = vector.broadcast %cst_17 : f32 to vector<16x128xf32>
    %24 = arith.maximumf %22, %23 : vector<16x128xf32>
    %25 = arith.truncf %24 : vector<16x128xf32> to vector<16x128xbf16>
    %c0_18 = arith.constant 0 : index
    %c0_19 = arith.constant 0 : index
    %26 = vector.load %arg8[%c0_18, %c0_19] : memref<128x128xbf16, #tpu.memory_space<vmem>>, vector<128x128xbf16>
    %cst_20 = arith.constant dense<0.000000e+00> : vector<16x128xf32>
    %27 = tpu.matmul %25, %26, %cst_20 {dimension_numbers = #tpu.dot_dimension_numbers<[1], [0], [0], [1], [0, 0, 1, 1], [], []>} : vector<16x128xbf16>, vector<128x128xbf16>, vector<16x128xf32> -> vector<16x128xf32>
    %c0_21 = arith.constant 0 : index
    %c0_22 = arith.constant 0 : index
    %28 = vector.load %arg9[%c0_21, %c0_22] : memref<1x128xf32, #tpu.memory_space<vmem>>, vector<1x128xf32>
    %29 = vector.broadcast %28 : vector<1x128xf32> to vector<16x128xf32>
    %30 = arith.addf %27, %29 : vector<16x128xf32>
    %cst_23 = arith.constant 0.000000e+00 : f32
    %31 = vector.broadcast %cst_23 : f32 to vector<16x128xf32>
    %32 = arith.maximumf %30, %31 : vector<16x128xf32>
    %33 = arith.truncf %32 : vector<16x128xf32> to vector<16x128xbf16>
    %c0_24 = arith.constant 0 : index
    %c0_25 = arith.constant 0 : index
    %34 = vector.load %arg10[%c0_24, %c0_25] : memref<8x128xbf16, #tpu.memory_space<vmem>>, vector<8x128xbf16>
    %cst_26 = arith.constant dense<0.000000e+00> : vector<8x16xf32>
    %35 = tpu.matmul %34, %33, %cst_26 {dimension_numbers = #tpu.dot_dimension_numbers<[1], [1], [0], [0], [0, 0, 1, 0], [], []>} : vector<8x128xbf16>, vector<16x128xbf16>, vector<8x16xf32> -> vector<8x16xf32>
    %c0_27 = arith.constant 0 : index
    %c0_28 = arith.constant 0 : index
    %36 = vector.load %arg11[%c0_27, %c0_28] : memref<8x1xf32, #tpu.memory_space<vmem>>, vector<8x1xf32>
    %37 = vector.broadcast %36 : vector<8x1xf32> to vector<8x16xf32>
    %38 = arith.addf %35, %37 : vector<8x16xf32>
    %c0_29 = arith.constant 0 : index
    %c0_30 = arith.constant 0 : index
    %39 = vector.load %arg12[%c0_29, %c0_30] : memref<8x16xf32, #tpu.memory_space<vmem>>, vector<8x16xf32>
    tpu.vector_store %arg12[%c0_29, %c0_30], %38 {strides = array<i32>} : memref<8x16xf32, #tpu.memory_space<vmem>>, vector<8x16xf32>,
    return
  }
  func.func @transform_0(%arg0: i32) -> (i32, i32) {
    %c0_i32 = arith.constant 0 : i32
    %c0_i32_0 = arith.constant 0 : i32
    return %arg0, %c0_i32 : i32, i32
  }
  func.func @transform_1(%arg0: i32) -> (i32, i32) {
    %c0_i32 = arith.constant 0 : i32
    %c0_i32_0 = arith.constant 0 : i32
    %c0_i32_1 = arith.constant 0 : i32
    return %c0_i32, %c0_i32_0 : i32, i32
  }
  func.func @transform_2(%arg0: i32) -> (i32, i32) {
    %c0_i32 = arith.constant 0 : i32
    %c0_i32_0 = arith.constant 0 : i32
    %c0_i32_1 = arith.constant 0 : i32
    return %c0_i32, %c0_i32_0 : i32, i32
  }
  func.func @transform_3(%arg0: i32) -> (i32, i32) {
    %c0_i32 = arith.constant 0 : i32
    %c0_i32_0 = arith.constant 0 : i32
    %c0_i32_1 = arith.constant 0 : i32
    return %c0_i32, %c0_i32_0 : i32, i32
  }
  func.func @transform_4(%arg0: i32) -> (i32, i32) {
    %c0_i32 = arith.constant 0 : i32
    %c0_i32_0 = arith.constant 0 : i32
    %c0_i32_1 = arith.constant 0 : i32
    return %c0_i32, %c0_i32_0 : i32, i32
  }
  func.func @transform_5(%arg0: i32) -> (i32, i32) {
    %c0_i32 = arith.constant 0 : i32
    %c0_i32_0 = arith.constant 0 : i32
    %c0_i32_1 = arith.constant 0 : i32
    return %c0_i32, %c0_i32_0 : i32, i32
  }
  func.func @transform_6(%arg0: i32) -> (i32, i32) {
    %c0_i32 = arith.constant 0 : i32
    %c0_i32_0 = arith.constant 0 : i32
    %c0_i32_1 = arith.constant 0 : i32
    return %c0_i32, %c0_i32_0 : i32, i32
  }
  func.func @transform_7(%arg0: i32) -> (i32, i32) {
    %c0_i32 = arith.constant 0 : i32
    %c0_i32_0 = arith.constant 0 : i32
    %c0_i32_1 = arith.constant 0 : i32
    return %c0_i32, %c0_i32_0 : i32, i32
  }
  func.func @transform_8(%arg0: i32) -> (i32, i32) {
    %c0_i32 = arith.constant 0 : i32
    %c0_i32_0 = arith.constant 0 : i32
    %c0_i32_1 = arith.constant 0 : i32
    return %c0_i32, %c0_i32_0 : i32, i32
  }
  func.func @transform_9(%arg0: i32) -> (i32, i32) {
    %c0_i32 = arith.constant 0 : i32
    %c0_i32_0 = arith.constant 0 : i32
    %c0_i32_1 = arith.constant 0 : i32
    return %c0_i32, %c0_i32_0 : i32, i32
  }
  func.func @transform_10(%arg0: i32) -> (i32, i32) {
    %c0_i32 = arith.constant 0 : i32
    %c0_i32_0 = arith.constant 0 : i32
    %c0_i32_1 = arith.constant 0 : i32
    return %c0_i32, %c0_i32_0 : i32, i32
  }
  func.func @transform_11(%arg0: i32) -> (i32, i32) {
    %c0_i32 = arith.constant 0 : i32
    %c0_i32_0 = arith.constant 0 : i32
    return %c0_i32, %arg0 : i32, i32
  }
}

</mosaic_0001>

<llo_original>
// kernel: _net_forward_padded.1
$region0: #{_net_forward_padded.1}
  #allocation0 [shape = 'u32[]', space=smem, size = 0x4, offset = 0x4, fixed_abs, tag = 'smem constant byte address 0x4 - core index']
  #allocation1 [shape = 'u32[144,128]{1,0:T(1,128)}', space=vmem, size = 0x12000, scoped, tag = 'internal scratch']
  %s0 = inlined_call_operand.hbm [shape: f32[16,512], index: 0, kind: input, shape index: {}]
  %s1 = inlined_call_operand.hbm [shape: bf16[512,256], index: 1, kind: input, shape index: {}]
  %s2 = inlined_call_operand.vmem [shape: f32[1,256], index: 2, kind: input, shape index: {}]
  %s3 = inlined_call_operand.hbm [shape: bf16[256,128], index: 3, kind: input, shape index: {}]
  %s4 = inlined_call_operand.vmem [shape: f32[1,128], index: 4, kind: input, shape index: {}]
  %s5 = inlined_call_operand.hbm [shape: bf16[128,128], index: 5, kind: input, shape index: {}]
  %s6 = inlined_call_operand.vmem [shape: f32[1,128], index: 6, kind: input, shape index: {}]
  %s7 = inlined_call_operand.hbm [shape: bf16[128,128], index: 7, kind: input, shape index: {}]
  %s8 = inlined_call_operand.vmem [shape: f32[1,128], index: 8, kind: input, shape index: {}]
  %s9 = inlined_call_operand.vmem [shape: bf16[8,128], index: 9, kind: input, shape index: {}]
  %s10 = inlined_call_operand.vmem [shape: f32[8,1], index: 10, kind: input, shape index: {}]
  %s11 = inlined_call_operand.hbm [shape: f32[8,16], index: 11, kind: output, shape index: {}]
  %s12 = sld [smem:[#allocation0]]
  $region74: #{_net_forward_padded.1} parent=0
    _
  %s14 = ssub.s32 1, %s12
  %s15 = scalar_select 0, %s14, %s12
  $region1: #{_net_forward_padded.1} parent=0
    #allocation2 [shape = 'u8[32768]{0}', space=vmem, size = 0x8000, scoped, tag = 'input window, operand 0, single buffered']
    #allocation3 [shape = 's32[1]{0}', space=sflag, size = 0x4, scoped, tag = 'scoped memory for _net_forward_padded.1']
    #allocation4 [shape = 's32[1]{0}', space=sflag, size = 0x4, scoped, tag = 'scoped memory for _net_forward_padded.1']
    #allocation5 [shape = 'u8[262144]{0}', space=vmem, size = 0x40000, scoped, tag = 'input window, operand 1, single buffered']
    #allocation6 [shape = 's32[1]{0}', space=sflag, size = 0x4, scoped, tag = 'scoped memory for _net_forward_padded.1']
    #allocation7 [shape = 'u8[65536]{0}', space=vmem, size = 0x10000, scoped, tag = 'input window, operand 3, single buffered']
    #allocation8 [shape = 'u8[32768]{0}', space=vmem, size = 0x8000, scoped, tag = 'input window, operand 5, single buffered']
    #allocation9 [shape = 's32[1]{0}', space=sflag, size = 0x4, scoped, tag = 'scoped memory for _net_forward_padded.1']
    #allocation10 [shape = 'u8[32768]{0}', space=vmem, size = 0x8000, scoped, tag = 'input window, operand 7, single buffered']
    #allocation11 [shape = 'u8[4096]{0}', space=vmem, size = 0x1000, scoped, tag = 'output window, operand 0, single buffered']
    %16 = vsyncpa [#allocation3], 0
    %17 = vsyncpa [#allocation6], 0
    %18 = vsyncpa [#allocation9], 0
    %19 = vsyncpa [#allocation4], 0
    // Predicated region
    $region2: #{_net_forward_padded.1} parent=1 // pred_check
      _
    $region3: #{_net_forward_padded.1} parent=1 // pred_check_branch
      %21 = sbr.rel (0) target = $region5
    $region4: #{_net_forward_padded.1} parent=1 // pred_region
      %s23 = ssub.s32 1024, 1024
      %24 = vsyncadd [#allocation3], %s23
      %s25 = sshll.u32 [#allocation2], 4
      %s26 = int_to_ptr.vmem [resolvable:$true] %s25
      %31 = dma.hbm_to_vmem [thread:$0]  %s0, 1024, %s26, [#allocation3], 512, 512, 32
    $region5: #{_net_forward_padded.1} parent=1 // pred_fallthru
      _
    // Predicated region
    $region6: #{_net_forward_padded.1} parent=1 // pred_check
      _
    $region7: #{_net_forward_padded.1} parent=1 // pred_check_branch
      %33 = sbr.rel (0) target = $region9
    $region8: #{_net_forward_padded.1} parent=1 // pred_region
      %s35 = ssub.s32 8192, 8192
      %36 = vsyncadd [#allocation6], %s35
      %s37 = sshll.u32 [#allocation5], 4
      %s38 = int_to_ptr.vmem [resolvable:$true] %s37
      %43 = dma.hbm_to_vmem [thread:$0]  %s1, 8192, %s38, [#allocation6], 128, 128, 8
    $region9: #{_net_forward_padded.1} parent=1 // pred_fallthru
      _
    // Predicated region
    $region10: #{_net_forward_padded.1} parent=1 // pred_check
      _
    $region11: #{_net_forward_padded.1} parent=1 // pred_check_branch
      %45 = sbr.rel (0) target = $region13
    $region12: #{_net_forward_padded.1} parent=1 // pred_region
      _
    $region13: #{_net_forward_padded.1} parent=1 // pred_fallthru
      _
    // Predicated region
    $region14: #{_net_forward_padded.1} parent=1 // pred_check
      _
    $region15: #{_net_forward_padded.1} parent=1 // pred_check_branch
      %47 = sbr.rel (0) target = $region17
    $region16: #{_net_forward_padded.1} parent=1 // pred_region
      %s49 = ssub.s32 2048, 2048
      %50 = vsyncadd [#allocation6], %s49
      %s51 = sshll.u32 [#allocation7], 4
      %s52 = int_to_ptr.vmem [resolvable:$true] %s51
      %57 = dma.hbm_to_vmem [thread:$0]  %s3, 2048, %s52, [#allocation6], 64, 64, 4
    $region17: #{_net_forward_padded.1} parent=1 // pred_fallthru
      _
    // Predicated region
    $region18: #{_net_forward_padded.1} parent=1 // pred_check
      _
    $region19: #{_net_forward_padded.1} parent=1 // pred_check_branch
      %59 = sbr.rel (0) target = $region21
    $region20: #{_net_forward_padded.1} parent=1 // pred_region
      _
    $region21: #{_net_forward_padded.1} parent=1 // pred_fallthru
      _
    // Predicated region
    $region22: #{_net_forward_padded.1} parent=1 // pred_check
      _
    $region23: #{_net_forward_padded.1} parent=1 // pred_check_branch
      %61 = sbr.rel (0) target = $region25
    $region24: #{_net_forward_padded.1} parent=1 // pred_region
      %s63 = ssub.s32 1024, 1024
      %64 = vsyncadd [#allocation9], %s63
      %s65 = sshll.u32 [#allocation8], 4
      %s66 = int_to_ptr.vmem [resolvable:$true] %s65
      %71 = dma.hbm_to_vmem [thread:$0]  %s5, 1024, %s66, [#allocation9], 64, 64, 4
    $region25: #{_net_forward_padded.1} parent=1 // pred_fallthru
      _
    // Predicated region
    $region26: #{_net_forward_padded.1} parent=1 // pred_check
      _
    $region27: #{_net_forward_padded.1} parent=1 // pred_check_branch
      %73 = sbr.rel (0) target = $region29
    $region28: #{_net_forward_padded.1} parent=1 // pred_region
      _
    $region29: #{_net_forward_padded.1} parent=1 // pred_fallthru
      _
    // Predicated region
    $region30: #{_net_forward_padded.1} parent=1 // pred_check
      _
    $region31: #{_net_forward_padded.1} parent=1 // pred_check_branch
      %75 = sbr.rel (0) target = $region33
    $region32: #{_net_forward_padded.1} parent=1 // pred_region
      %s77 = ssub.s32 1024, 1024
      %78 = vsyncadd [#allocation9], %s77
      %s79 = sshll.u32 [#allocation10], 4
      %s80 = int_to_ptr.vmem [resolvable:$true] %s79
      %85 = dma.hbm_to_vmem [thread:$0]  %s7, 1024, %s80, [#allocation9], 64, 64, 4
    $region33: #{_net_forward_padded.1} parent=1 // pred_fallthru
      _
    // Predicated region
    $region34: #{_net_forward_padded.1} parent=1 // pred_check
      _
    $region35: #{_net_forward_padded.1} parent=1 // pred_check_branch
      %87 = sbr.rel (0) target = $region37
    $region36: #{_net_forward_padded.1} parent=1 // pred_region
      _
    $region37: #{_net_forward_padded.1} parent=1 // pred_fallthru
      _
    // Predicated region
    $region38: #{_net_forward_padded.1} parent=1 // pred_check
      _
    $region39: #{_net_forward_padded.1} parent=1 // pred_check_branch
      %89 = sbr.rel (0) target = $region41
    $region40: #{_net_forward_padded.1} parent=1 // pred_region
      _
    $region41: #{_net_forward_padded.1} parent=1 // pred_fallthru
      _
    // Predicated region
    $region42: #{_net_forward_padded.1} parent=1 // pred_check
      _
    $region43: #{_net_forward_padded.1} parent=1 // pred_check_branch
      %91 = sbr.rel (0) target = $region45
    $region44: #{_net_forward_padded.1} parent=1 // pred_region
      _
    $region45: #{_net_forward_padded.1} parent=1 // pred_fallthru
      _
    // Predicated region
    $region46: #{_net_forward_padded.1} parent=1 // pred_check
      _
    $region47: #{_net_forward_padded.1} parent=1 // pred_check_branch
      %93 = sbr.rel (0) target = $region49
    $region48: #{_net_forward_padded.1} parent=1 // pred_region
      %94 = dma.done [#allocation3], 1024
    $region49: #{_net_forward_padded.1} parent=1 // pred_fallthru
      _
    // Predicated region
    $region50: #{_net_forward_padded.1} parent=1 // pred_check
      _
    $region51: #{_net_forward_padded.1} parent=1 // pred_check_branch
      %96 = sbr.rel (0) target = $region53
    $region52: #{_net_forward_padded.1} parent=1 // pred_region
      %97 = dma.done [#allocation6], 8192
    $region53: #{_net_forward_padded.1} parent=1 // pred_fallthru
      _
    // Predicated region
    $region54: #{_net_forward_padded.1} parent=1 // pred_check
      _
    $region55: #{_net_forward_padded.1} parent=1 // pred_check_branch
      %99 = sbr.rel (0) target = $region57
    $region56: #{_net_forward_padded.1} parent=1 // pred_region
      %100 = dma.done [#allocation6], 2048
    $region57: #{_net_forward_padded.1} parent=1 // pred_fallthru
      _
    // Predicated region
    $region58: #{_net_forward_padded.1} parent=1 // pred_check
      _
    $region59: #{_net_forward_padded.1} parent=1 // pred_check_branch
      %102 = sbr.rel (0) target = $region61
    $region60: #{_net_forward_padded.1} parent=1 // pred_region
      %103 = dma.done [#allocation9], 1024
    $region61: #{_net_forward_padded.1} parent=1 // pred_fallthru
      _
    // Predicated region
    $region62: #{_net_forward_padded.1} parent=1 // pred_check
      _
    $region63: #{_net_forward_padded.1} parent=1 // pred_check_branch
      %105 = sbr.rel (0) target = $region65
    $region64: #{_net_forward_padded.1} parent=1 // pred_region
      %106 = dma.done [#allocation9], 1024
    $region65: #{_net_forward_padded.1} parent=1 // pred_fallthru
      _
    %v108 = vld [vmem:[#allocation2] sm:$0xff]
    %v109 = vld [vmem:[#allocation2 + $0x8] sm:$0xff]
    %v110 = vld [vmem:[#allocation2 + $0x10] sm:$0xff]
    %v111 = vld [vmem:[#allocation2 + $0x18] sm:$0xff]
    %v112 = vld [vmem:[#allocation2 + $0x20] sm:$0xff]
    %v113 = vld [vmem:[#allocation2 + $0x28] sm:$0xff]
    %v114 = vld [vmem:[#allocation2 + $0x30] sm:$0xff]
    %v115 = vld [vmem:[#allocation2 + $0x38] sm:$0xff]
    %v116 = vpack.c.bf16 %v112, %v108
    %v117 = vpack.c.bf16 %v113, %v109
    %v118 = vpack.c.bf16 %v114, %v110
    %v119 = vpack.c.bf16 %v115, %v111
    %v120 = vld [vmem:[#allocation5] sm:$0xff]
    %v121 = vld [vmem:[#allocation5 + $0x8] sm:$0xff]
    %v122 = vld [vmem:[#allocation5 + $0x10] sm:$0xff]
    %v123 = vld [vmem:[#allocation5 + $0x18] sm:$0xff]
    %v124 = vld [vmem:[#allocation5 + $0x20] sm:$0xff]
    %v125 = vld [vmem:[#allocation5 + $0x28] sm:$0xff]
    %v126 = vld [vmem:[#allocation5 + $0x30] sm:$0xff]
    %v127 = vld [vmem:[#allocation5 + $0x38] sm:$0xff]
    %v128 = vld [vmem:[#allocation5 + $0x40] sm:$0xff]
    %v129 = vld [vmem:[#allocation5 + $0x48] sm:$0xff]
    %v130 = vld [vmem:[#allocation5 + $0x50] sm:$0xff]
    %v131 = vld [vmem:[#allocation5 + $0x58] sm:$0xff]
    %v132 = vld [vmem:[#allocation5 + $0x60] sm:$0xff]
    %v133 = vld [vmem:[#allocation5 + $0x68] sm:$0xff]
    %v134 = vld [vmem:[#allocation5 + $0x70] sm:$0xff]
    %v135 = vld [vmem:[#allocation5 + $0x78] sm:$0xff]
    %v136 = vld [vmem:[#allocation5 + $0x80] sm:$0xff]
    %v137 = vld [vmem:[#allocation5 + $0x88] sm:$0xff]
    %v138 = vld [vmem:[#allocation5 + $0x90] sm:$0xff]
    %v139 = vld [vmem:[#allocation5 + $0x98] sm:$0xff]
    %v140 = vld [vmem:[#allocation5 + $0xa0] sm:$0xff]
    %v141 = vld [vmem:[#allocation5 + $0xa8] sm:$0xff]
    %v142 = vld [vmem:[#allocation5 + $0xb0] sm:$0xff]
    %v143 = vld [vmem:[#allocation5 + $0xb8] sm:$0xff]
    %v144 = vld [vmem:[#allocation5 + $0xc0] sm:$0xff]
    %v145 = vld [vmem:[#allocation5 + $0xc8] sm:$0xff]
    %v146 = vld [vmem:[#allocation5 + $0xd0] sm:$0xff]
    %v147 = vld [vmem:[#allocation5 + $0xd8] sm:$0xff]
    %v148 = vld [vmem:[#allocation5 + $0xe0] sm:$0xff]
    %v149 = vld [vmem:[#allocation5 + $0xe8] sm:$0xff]
    %v150 = vld [vmem:[#allocation5 + $0xf0] sm:$0xff]
    %v151 = vld [vmem:[#allocation5 + $0xf8] sm:$0xff]
    %v152 = vld [vmem:[#allocation5 + $0x100] sm:$0xff]
    %v153 = vld [vmem:[#allocation5 + $0x108] sm:$0xff]
    %v154 = vld [vmem:[#allocation5 + $0x110] sm:$0xff]
    %v155 = vld [vmem:[#allocation5 + $0x118] sm:$0xff]
    %v156 = vld [vmem:[#allocation5 + $0x120] sm:$0xff]
    %v157 = vld [vmem:[#allocation5 + $0x128] sm:$0xff]
    %v158 = vld [vmem:[#allocation5 + $0x130] sm:$0xff]
    %v159 = vld [vmem:[#allocation5 + $0x138] sm:$0xff]
    %v160 = vld [vmem:[#allocation5 + $0x140] sm:$0xff]
    %v161 = vld [vmem:[#allocation5 + $0x148] sm:$0xff]
    %v162 = vld [vmem:[#allocation5 + $0x150] sm:$0xff]
    %v163 = vld [vmem:[#allocation5 + $0x158] sm:$0xff]
    %v164 = vld [vmem:[#allocation5 + $0x160] sm:$0xff]
    %v165 = vld [vmem:[#allocation5 + $0x168] sm:$0xff]
    %v166 = vld [vmem:[#allocation5 + $0x170] sm:$0xff]
    %v167 = vld [vmem:[#allocation5 + $0x178] sm:$0xff]
    %v168 = vld [vmem:[#allocation5 + $0x180] sm:$0xff]
    %v169 = vld [vmem:[#allocation5 + $0x188] sm:$0xff]
    %v170 = vld [vmem:[#allocation5 + $0x190] sm:$0xff]
    %v171 = vld [vmem:[#allocation5 + $0x198] sm:$0xff]
    %v172 = vld [vmem:[#allocation5 + $0x1a0] sm:$0xff]
    %v173 = vld [vmem:[#allocation5 + $0x1a8] sm:$0xff]
    %v174 = vld [vmem:[#allocation5 + $0x1b0] sm:$0xff]
    %v175 = vld [vmem:[#allocation5 + $0x1b8] sm:$0xff]
    %v176 = vld [vmem:[#allocation5 + $0x1c0] sm:$0xff]
    %v177 = vld [vmem:[#allocation5 + $0x1c8] sm:$0xff]
    %v178 = vld [vmem:[#allocation5 + $0x1d0] sm:$0xff]
    %v179 = vld [vmem:[#allocation5 + $0x1d8] sm:$0xff]
    %v180 = vld [vmem:[#allocation5 + $0x1e0] sm:$0xff]
    %v181 = vld [vmem:[#allocation5 + $0x1e8] sm:$0xff]
    %v182 = vld [vmem:[#allocation5 + $0x1f0] sm:$0xff]
    %v183 = vld [vmem:[#allocation5 + $0x1f8] sm:$0xff]
    %v184 = vld [vmem:[%s2] sm:$0x3]
    %v186 = vlaneseq
    %v187 = vshrl.u32 %v186, 7
    %v188 = vsub.s32 0, %v187
    %v189 = vrot.slane %v184, %v188
    %v190 = vlaneseq
    %v191 = vshrl.u32 %v190, 7
    %v192 = vsub.s32 1, %v191
    %v193 = vrot.slane %v184, %v192
    %v260 = vunpack.c.l.b16 %v120
    %v261 = vunpack.c.h.b16 %v120
    %v262 = vunpack.c.l.b16 %v121
    %v263 = vunpack.c.h.b16 %v121
    %v264 = vunpack.c.l.b16 %v122
    %v265 = vunpack.c.h.b16 %v122
    %v266 = vunpack.c.l.b16 %v123
    %v267 = vunpack.c.h.b16 %v123
    %v268 = vunpack.c.l.b16 %v124
    %v269 = vunpack.c.h.b16 %v124
    %v270 = vunpack.c.l.b16 %v125
    %v271 = vunpack.c.h.b16 %v125
    %v272 = vunpack.c.l.b16 %v126
    %v273 = vunpack.c.h.b16 %v126
    %v274 = vunpack.c.l.b16 %v127
    %v275 = vunpack.c.h.b16 %v127
    %v276 = vunpack.c.l.b16 %v128
    %v277 = vunpack.c.h.b16 %v128
    %v278 = vunpack.c.l.b16 %v129
    %v279 = vunpack.c.h.b16 %v129
    %v280 = vunpack.c.l.b16 %v130
    %v281 = vunpack.c.h.b16 %v130
    %v282 = vunpack.c.l.b16 %v131
    %v283 = vunpack.c.h.b16 %v131
    %v284 = vunpack.c.l.b16 %v132
    %v285 = vunpack.c.h.b16 %v132
    %v286 = vunpack.c.l.b16 %v133
    %v287 = vunpack.c.h.b16 %v133
    %v288 = vunpack.c.l.b16 %v134
    %v289 = vunpack.c.h.b16 %v134
    %v290 = vunpack.c.l.b16 %v135
    %v291 = vunpack.c.h.b16 %v135
    %v292 = vunpack.c.l.b16 %v136
    %v293 = vunpack.c.h.b16 %v136
    %v294 = vunpack.c.l.b16 %v137
    %v295 = vunpack.c.h.b16 %v137
    %v296 = vunpack.c.l.b16 %v138
    %v297 = vunpack.c.h.b16 %v138
    %v298 = vunpack.c.l.b16 %v139
    %v299 = vunpack.c.h.b16 %v139
    %v300 = vunpack.c.l.b16 %v140
    %v301 = vunpack.c.h.b16 %v140
    %v302 = vunpack.c.l.b16 %v141
    %v303 = vunpack.c.h.b16 %v141
    %v304 = vunpack.c.l.b16 %v142
    %v305 = vunpack.c.h.b16 %v142
    %v306 = vunpack.c.l.b16 %v143
    %v307 = vunpack.c.h.b16 %v143
    %v308 = vunpack.c.l.b16 %v144
    %v309 = vunpack.c.h.b16 %v144
    %v310 = vunpack.c.l.b16 %v145
    %v311 = vunpack.c.h.b16 %v145
    %v312 = vunpack.c.l.b16 %v146
    %v313 = vunpack.c.h.b16 %v146
    %v314 = vunpack.c.l.b16 %v147
    %v315 = vunpack.c.h.b16 %v147
    %v316 = vunpack.c.l.b16 %v148
    %v317 = vunpack.c.h.b16 %v148
    %v318 = vunpack.c.l.b16 %v149
    %v319 = vunpack.c.h.b16 %v149
    %v320 = vunpack.c.l.b16 %v150
    %v321 = vunpack.c.h.b16 %v150
    %v322 = vunpack.c.l.b16 %v151
    %v323 = vunpack.c.h.b16 %v151
    %v324 = vunpack.c.l.b16 %v152
    %v325 = vunpack.c.h.b16 %v152
    %v326 = vunpack.c.l.b16 %v153
    %v327 = vunpack.c.h.b16 %v153
    %v328 = vunpack.c.l.b16 %v154
    %v329 = vunpack.c.h.b16 %v154
    %v330 = vunpack.c.l.b16 %v155
    %v331 = vunpack.c.h.b16 %v155
    %v332 = vunpack.c.l.b16 %v156
    %v333 = vunpack.c.h.b16 %v156
    %v334 = vunpack.c.l.b16 %v157
    %v335 = vunpack.c.h.b16 %v157
    %v336 = vunpack.c.l.b16 %v158
    %v337 = vunpack.c.h.b16 %v158
    %v338 = vunpack.c.l.b16 %v159
    %v339 = vunpack.c.h.b16 %v159
    %v340 = vunpack.c.l.b16 %v160
    %v341 = vunpack.c.h.b16 %v160
    %v342 = vunpack.c.l.b16 %v161
    %v343 = vunpack.c.h.b16 %v161
    %v344 = vunpack.c.l.b16 %v162
    %v345 = vunpack.c.h.b16 %v162
    %v346 = vunpack.c.l.b16 %v163
    %v347 = vunpack.c.h.b16 %v163
    %v348 = vunpack.c.l.b16 %v164
    %v349 = vunpack.c.h.b16 %v164
    %v350 = vunpack.c.l.b16 %v165
    %v351 = vunpack.c.h.b16 %v165
    %v352 = vunpack.c.l.b16 %v166
    %v353 = vunpack.c.h.b16 %v166
    %v354 = vunpack.c.l.b16 %v167
    %v355 = vunpack.c.h.b16 %v167
    %v356 = vunpack.c.l.b16 %v168
    %v357 = vunpack.c.h.b16 %v168
    %v358 = vunpack.c.l.b16 %v169
    %v359 = vunpack.c.h.b16 %v169
    %v360 = vunpack.c.l.b16 %v170
    %v361 = vunpack.c.h.b16 %v170
    %v362 = vunpack.c.l.b16 %v171
    %v363 = vunpack.c.h.b16 %v171
    %v364 = vunpack.c.l.b16 %v172
    %v365 = vunpack.c.h.b16 %v172
    %v366 = vunpack.c.l.b16 %v173
    %v367 = vunpack.c.h.b16 %v173
    %v368 = vunpack.c.l.b16 %v174
    %v369 = vunpack.c.h.b16 %v174
    %v370 = vunpack.c.l.b16 %v175
    %v371 = vunpack.c.h.b16 %v175
    %v372 = vunpack.c.l.b16 %v176
    %v373 = vunpack.c.h.b16 %v176
    %v374 = vunpack.c.l.b16 %v177
    %v375 = vunpack.c.h.b16 %v177
    %v376 = vunpack.c.l.b16 %v178
    %v377 = vunpack.c.h.b16 %v178
    %v378 = vunpack.c.l.b16 %v179
    %v379 = vunpack.c.h.b16 %v179
    %v380 = vunpack.c.l.b16 %v180
    %v381 = vunpack.c.h.b16 %v180
    %v382 = vunpack.c.l.b16 %v181
    %v383 = vunpack.c.h.b16 %v181
    %v384 = vunpack.c.l.b16 %v182
    %v385 = vunpack.c.h.b16 %v182
    %v386 = vunpack.c.l.b16 %v183
    %v387 = vunpack.c.h.b16 %v183
    %v388 = vpack.c.b16 %v262, %v260
    %v389 = vpack.c.b16 %v263, %v261
    %v390 = vpack.c.b16 %v266, %v264
    %v391 = vpack.c.b16 %v267, %v265
    %v392 = vpack.c.b16 %v270, %v268
    %v393 = vpack.c.b16 %v271, %v269
    %v394 = vpack.c.b16 %v274, %v272
    %v395 = vpack.c.b16 %v275, %v273
    %v396 = vpack.c.b16 %v278, %v276
    %v397 = vpack.c.b16 %v279, %v277
    %v398 = vpack.c.b16 %v282, %v280
    %v399 = vpack.c.b16 %v283, %v281
    %v400 = vpack.c.b16 %v286, %v284
    %v401 = vpack.c.b16 %v287, %v285
    %v402 = vpack.c.b16 %v290, %v288
    %v403 = vpack.c.b16 %v291, %v289
    %v404 = vpack.c.b16 %v294, %v292
    %v405 = vpack.c.b16 %v295, %v293
    %v406 = vpack.c.b16 %v298, %v296
    %v407 = vpack.c.b16 %v299, %v297
    %v408 = vpack.c.b16 %v302, %v300
    %v409 = vpack.c.b16 %v303, %v301
    %v410 = vpack.c.b16 %v306, %v304
    %v411 = vpack.c.b16 %v307, %v305
    %v412 = vpack.c.b16 %v310, %v308
    %v413 = vpack.c.b16 %v311, %v309
    %v414 = vpack.c.b16 %v314, %v312
    %v415 = vpack.c.b16 %v315, %v313
    %v416 = vpack.c.b16 %v318, %v316
    %v417 = vpack.c.b16 %v319, %v317
    %v418 = vpack.c.b16 %v322, %v320
    %v419 = vpack.c.b16 %v323, %v321
    %v420 = vpack.c.b16 %v326, %v324
    %v421 = vpack.c.b16 %v327, %v325
    %v422 = vpack.c.b16 %v330, %v328
    %v423 = vpack.c.b16 %v331, %v329
    %v424 = vpack.c.b16 %v334, %v332
    %v425 = vpack.c.b16 %v335, %v333
    %v426 = vpack.c.b16 %v338, %v336
    %v427 = vpack.c.b16 %v339, %v337
    %v428 = vpack.c.b16 %v342, %v340
    %v429 = vpack.c.b16 %v343, %v341
    %v430 = vpack.c.b16 %v346, %v344
    %v431 = vpack.c.b16 %v347, %v345
    %v432 = vpack.c.b16 %v350, %v348
    %v433 = vpack.c.b16 %v351, %v349
    %v434 = vpack.c.b16 %v354, %v352
    %v435 = vpack.c.b16 %v355, %v353
    %v436 = vpack.c.b16 %v358, %v356
    %v437 = vpack.c.b16 %v359, %v357
    %v438 = vpack.c.b16 %v362, %v360
    %v439 = vpack.c.b16 %v363, %v361
    %v440 = vpack.c.b16 %v366, %v364
    %v441 = vpack.c.b16 %v367, %v365
    %v442 = vpack.c.b16 %v370, %v368
    %v443 = vpack.c.b16 %v371, %v369
    %v444 = vpack.c.b16 %v374, %v372
    %v445 = vpack.c.b16 %v375, %v373
    %v446 = vpack.c.b16 %v378, %v376
    %v447 = vpack.c.b16 %v379, %v377
    %v448 = vpack.c.b16 %v382, %v380
    %v449 = vpack.c.b16 %v383, %v381
    %v450 = vpack.c.b16 %v386, %v384
    %v451 = vpack.c.b16 %v387, %v385
    %516 = vmatprep.subr.bf16.mxu0 %v403
    %517 = vmatpush1.bf16.msra.mxu0 %v402
    %518 = vmatprep.subr.bf16.mxu0 %v401
    %519 = vmatpush1.bf16.msra.mxu0 %v400
    %520 = vmatprep.subr.bf16.mxu0 %v399
    %521 = vmatpush1.bf16.msra.mxu0 %v398
    %522 = vmatprep.subr.bf16.mxu0 %v397
    %523 = vmatpush1.bf16.msra.mxu0 %v396
    %524 = vmatprep.subr.bf16.mxu0 %v395
    %525 = vmatpush1.bf16.msra.mxu0 %v394
    %526 = vmatprep.subr.bf16.mxu0 %v393
    %527 = vmatpush1.bf16.msra.mxu0 %v392
    %528 = vmatprep.subr.bf16.mxu0 %v391
    %529 = vmatpush1.bf16.msra.mxu0 %v390
    %530 = vmatprep.subr.bf16.mxu0 %v389
    %531 = vmatpush1.bf16.msra.mxu0 %v388
    %532 = vmatprep.subr.bf16.mxu0 %v419
    %533 = vmatpush2.bf16.msra.mxu0 %v418
    %534 = vmatprep.subr.bf16.mxu0 %v417
    %535 = vmatpush2.bf16.msra.mxu0 %v416
    %536 = vmatprep.subr.bf16.mxu0 %v415
    %537 = vmatpush2.bf16.msra.mxu0 %v414
    %538 = vmatprep.subr.bf16.mxu0 %v413
    %539 = vmatpush2.bf16.msra.mxu0 %v412
    %540 = vmatprep.subr.bf16.mxu0 %v411
    %541 = vmatpush2.bf16.msra.mxu0 %v410
    %542 = vmatprep.subr.bf16.mxu0 %v409
    %543 = vmatpush2.bf16.msra.mxu0 %v408
    %544 = vmatprep.subr.bf16.mxu0 %v407
    %545 = vmatpush2.bf16.msra.mxu0 %v406
    %546 = vmatprep.subr.bf16.mxu0 %v405
    %547 = vmatpush2.bf16.msra.mxu0 %v404
    %548 = vmatprep.mubr.bf16.mxu0 %v117
    %549 = vmatmul.mubr.bf16.gmra.mxu0 %v116
    %v550 = vpop.f32.mrf.mxu0
    %v551 = vadd.f32 %v189, %v550
    %v552 = vpop.f32.mrf.mxu0
    %v553 = vadd.f32 %v193, %v552
    %v554 = vpop.f32.mrf.mxu0
    %v555 = vadd.f32 %v189, %v554
    %v556 = vpop.f32.mrf.mxu0
    %v557 = vadd.f32 %v193, %v556
    %558 = vdwg.mxu0
    %559 = vmatprep.subr.bf16.mxu0 %v435
    %560 = vmatpush1.bf16.msra.mxu0 %v434
    %561 = vmatprep.subr.bf16.mxu0 %v433
    %562 = vmatpush1.bf16.msra.mxu0 %v432
    %563 = vmatprep.subr.bf16.mxu0 %v431
    %564 = vmatpush1.bf16.msra.mxu0 %v430
    %565 = vmatprep.subr.bf16.mxu0 %v429
    %566 = vmatpush1.bf16.msra.mxu0 %v428
    %567 = vmatprep.subr.bf16.mxu0 %v427
    %568 = vmatpush1.bf16.msra.mxu0 %v426
    %569 = vmatprep.subr.bf16.mxu0 %v425
    %570 = vmatpush1.bf16.msra.mxu0 %v424
    %571 = vmatprep.subr.bf16.mxu0 %v423
    %572 = vmatpush1.bf16.msra.mxu0 %v422
    %573 = vmatprep.subr.bf16.mxu0 %v421
    %574 = vmatpush1.bf16.msra.mxu0 %v420
    %575 = vmatprep.subr.bf16.mxu0 %v451
    %576 = vmatpush2.bf16.msra.mxu0 %v450
    %577 = vmatprep.subr.bf16.mxu0 %v449
    %578 = vmatpush2.bf16.msra.mxu0 %v448
    %579 = vmatprep.subr.bf16.mxu0 %v447
    %580 = vmatpush2.bf16.msra.mxu0 %v446
    %581 = vmatprep.subr.bf16.mxu0 %v445
    %582 = vmatpush2.bf16.msra.mxu0 %v444
    %583 = vmatprep.subr.bf16.mxu0 %v443
    %584 = vmatpush2.bf16.msra.mxu0 %v442
    %585 = vmatprep.subr.bf16.mxu0 %v441
    %586 = vmatpush2.bf16.msra.mxu0 %v440
    %587 = vmatprep.subr.bf16.mxu0 %v439
    %588 = vmatpush2.bf16.msra.mxu0 %v438
    %589 = vmatprep.subr.bf16.mxu0 %v437
    %590 = vmatpush2.bf16.msra.mxu0 %v436
    %591 = vmatprep.mubr.bf16.mxu0 %v119
    %592 = vmatmul.mubr.bf16.gmra.mxu0 %v118
    %v593 = vpop.f32.mrf.mxu0
    %v594 = vadd.f32 %v551, %v593
    %v595 = vpop.f32.mrf.mxu0
    %v596 = vadd.f32 %v553, %v595
    %v597 = vpop.f32.mrf.mxu0
    %v598 = vadd.f32 %v555, %v597
    %v599 = vpop.f32.mrf.mxu0
    %v600 = vadd.f32 %v557, %v599
    %601 = vdwg.mxu0
    %v602 = vmax.f32 %v594, 0.0
    %v603 = vmax.f32 %v596, 0.0
    %v604 = vmax.f32 %v598, 0.0
    %v605 = vmax.f32 %v600, 0.0
    %v606 = vpack.c.bf16 %v604, %v602
    %v607 = vpack.c.bf16 %v605, %v603
    %v608 = vld [vmem:[#allocation7] sm:$0xf]
    %v609 = vld [vmem:[#allocation7 + $0x4] sm:$0xf]
    %v610 = vld [vmem:[#allocation7 + $0x8] sm:$0xf]
    %v611 = vld [vmem:[#allocation7 + $0xc] sm:$0xf]
    %v612 = vld [vmem:[#allocation7 + $0x10] sm:$0xf]
    %v613 = vld [vmem:[#allocation7 + $0x14] sm:$0xf]
    %v614 = vld [vmem:[#allocation7 + $0x18] sm:$0xf]
    %v615 = vld [vmem:[#allocation7 + $0x1c] sm:$0xf]
    %v616 = vld [vmem:[#allocation7 + $0x20] sm:$0xf]
    %v617 = vld [vmem:[#allocation7 + $0x24] sm:$0xf]
    %v618 = vld [vmem:[#allocation7 + $0x28] sm:$0xf]
    %v619 = vld [vmem:[#allocation7 + $0x2c] sm:$0xf]
    %v620 = vld [vmem:[#allocation7 + $0x30] sm:$0xf]
    %v621 = vld [vmem:[#allocation7 + $0x34] sm:$0xf]
    %v622 = vld [vmem:[#allocation7 + $0x38] sm:$0xf]
    %v623 = vld [vmem:[#allocation7 + $0x3c] sm:$0xf]
    %v624 = vld [vmem:[#allocation7 + $0x40] sm:$0xf]
    %v625 = vld [vmem:[#allocation7 + $0x44] sm:$0xf]
    %v626 = vld [vmem:[#allocation7 + $0x48] sm:$0xf]
    %v627 = vld [vmem:[#allocation7 + $0x4c] sm:$0xf]
    %v628 = vld [vmem:[#allocation7 + $0x50] sm:$0xf]
    %v629 = vld [vmem:[#allocation7 + $0x54] sm:$0xf]
    %v630 = vld [vmem:[#allocation7 + $0x58] sm:$0xf]
    %v631 = vld [vmem:[#allocation7 + $0x5c] sm:$0xf]
    %v632 = vld [vmem:[#allocation7 + $0x60] sm:$0xf]
    %v633 = vld [vmem:[#allocation7 + $0x64] sm:$0xf]
    %v634 = vld [vmem:[#allocation7 + $0x68] sm:$0xf]
    %v635 = vld [vmem:[#allocation7 + $0x6c] sm:$0xf]
    %v636 = vld [vmem:[#allocation7 + $0x70] sm:$0xf]
    %v637 = vld [vmem:[#allocation7 + $0x74] sm:$0xf]
    %v638 = vld [vmem:[#allocation7 + $0x78] sm:$0xf]
    %v639 = vld [vmem:[#allocation7 + $0x7c] sm:$0xf]
    %v640 = vld [vmem:[%s4] sm:$0x1]
    %v642 = vlaneseq
    %v643 = vshrl.u32 %v642, 7
    %v644 = vsub.s32 0, %v643
    %v645 = vrot.slane %v640, %v644
    %v679 = vunpack.c.l.b16 %v608
    %v680 = vunpack.c.l.b16 %v609
    %v681 = vunpack.c.l.b16 %v610
    %v682 = vunpack.c.l.b16 %v611
    %v683 = vunpack.c.l.b16 %v612
    %v684 = vunpack.c.l.b16 %v613
    %v685 = vunpack.c.l.b16 %v614
    %v686 = vunpack.c.l.b16 %v615
    %v687 = vunpack.c.l.b16 %v616
    %v688 = vunpack.c.l.b16 %v617
    %v689 = vunpack.c.l.b16 %v618
    %v690 = vunpack.c.l.b16 %v619
    %v691 = vunpack.c.l.b16 %v620
    %v692 = vunpack.c.l.b16 %v621
    %v693 = vunpack.c.l.b16 %v622
    %v694 = vunpack.c.l.b16 %v623
    %v695 = vunpack.c.l.b16 %v624
    %v696 = vunpack.c.l.b16 %v625
    %v697 = vunpack.c.l.b16 %v626
    %v698 = vunpack.c.l.b16 %v627
    %v699 = vunpack.c.l.b16 %v628
    %v700 = vunpack.c.l.b16 %v629
    %v701 = vunpack.c.l.b16 %v630
    %v702 = vunpack.c.l.b16 %v631
    %v703 = vunpack.c.l.b16 %v632
    %v704 = vunpack.c.l.b16 %v633
    %v705 = vunpack.c.l.b16 %v634
    %v706 = vunpack.c.l.b16 %v635
    %v707 = vunpack.c.l.b16 %v636
    %v708 = vunpack.c.l.b16 %v637
    %v709 = vunpack.c.l.b16 %v638
    %v710 = vunpack.c.l.b16 %v639
    %v711 = vpack.c.b16 %v680, %v679
    %v712 = vpack.c.b16 %v682, %v681
    %v713 = vpack.c.b16 %v684, %v683
    %v714 = vpack.c.b16 %v686, %v685
    %v715 = vpack.c.b16 %v688, %v687
    %v716 = vpack.c.b16 %v690, %v689
    %v717 = vpack.c.b16 %v692, %v691
    %v718 = vpack.c.b16 %v694, %v693
    %v719 = vpack.c.b16 %v696, %v695
    %v720 = vpack.c.b16 %v698, %v697
    %v721 = vpack.c.b16 %v700, %v699
    %v722 = vpack.c.b16 %v702, %v701
    %v723 = vpack.c.b16 %v704, %v703
    %v724 = vpack.c.b16 %v706, %v705
    %v725 = vpack.c.b16 %v708, %v707
    %v726 = vpack.c.b16 %v710, %v709
    %743 = vmatprep.subr.bf16.mxu0 0
    %744 = vmatpush1.bf16.msra.mxu0 %v718
    %745 = vmatprep.subr.bf16.mxu0 0
    %746 = vmatpush1.bf16.msra.mxu0 %v717
    %747 = vmatprep.subr.bf16.mxu0 0
    %748 = vmatpush1.bf16.msra.mxu0 %v716
    %749 = vmatprep.subr.bf16.mxu0 0
    %750 = vmatpush1.bf16.msra.mxu0 %v715
    %751 = vmatprep.subr.bf16.mxu0 0
    %752 = vmatpush1.bf16.msra.mxu0 %v714
    %753 = vmatprep.subr.bf16.mxu0 0
    %754 = vmatpush1.bf16.msra.mxu0 %v713
    %755 = vmatprep.subr.bf16.mxu0 0
    %756 = vmatpush1.bf16.msra.mxu0 %v712
    %757 = vmatprep.subr.bf16.mxu0 0
    %758 = vmatpush1.bf16.msra.mxu0 %v711
    %759 = vmatprep.subr.bf16.mxu0 0
    %760 = vmatpush2.bf16.msra.mxu0 %v726
    %761 = vmatprep.subr.bf16.mxu0 0
    %762 = vmatpush2.bf16.msra.mxu0 %v725
    %763 = vmatprep.subr.bf16.mxu0 0
    %764 = vmatpush2.bf16.msra.mxu0 %v724
    %765 = vmatprep.subr.bf16.mxu0 0
    %766 = vmatpush2.bf16.msra.mxu0 %v723
    %767 = vmatprep.subr.bf16.mxu0 0
    %768 = vmatpush2.bf16.msra.mxu0 %v722
    %769 = vmatprep.subr.bf16.mxu0 0
    %770 = vmatpush2.bf16.msra.mxu0 %v721
    %771 = vmatprep.subr.bf16.mxu0 0
    %772 = vmatpush2.bf16.msra.mxu0 %v720
    %773 = vmatprep.subr.bf16.mxu0 0
    %774 = vmatpush2.bf16.msra.mxu0 %v719
    %775 = vmatprep.mubr.bf16.mxu0 %v607
    %776 = vmatmul.mubr.bf16.gmra.mxu0 %v606
    %v777 = vpop.f32.mrf.mxu0
    %v778 = vadd.f32 %v645, %v777
    %v779 = vpop.f32.mrf.mxu0
    %v780 = vpop.f32.mrf.mxu0
    %v781 = vadd.f32 %v645, %v780
    %v782 = vpop.f32.mrf.mxu0
    %783 = vdwg.mxu0
    %v784 = vmax.f32 %v778, 0.0
    %v785 = vmax.f32 %v781, 0.0
    %v786 = vpack.c.bf16 %v785, %v784
    %v787 = vld [vmem:[#allocation8] sm:$0xf]
    %v788 = vld [vmem:[#allocation8 + $0x4] sm:$0xf]
    %v789 = vld [vmem:[#allocation8 + $0x8] sm:$0xf]
    %v790 = vld [vmem:[#allocation8 + $0xc] sm:$0xf]
    %v791 = vld [vmem:[#allocation8 + $0x10] sm:$0xf]
    %v792 = vld [vmem:[#allocation8 + $0x14] sm:$0xf]
    %v793 = vld [vmem:[#allocation8 + $0x18] sm:$0xf]
    %v794 = vld [vmem:[#allocation8 + $0x1c] sm:$0xf]
    %v795 = vld [vmem:[#allocation8 + $0x20] sm:$0xf]
    %v796 = vld [vmem:[#allocation8 + $0x24] sm:$0xf]
    %v797 = vld [vmem:[#allocation8 + $0x28] sm:$0xf]
    %v798 = vld [vmem:[#allocation8 + $0x2c] sm:$0xf]
    %v799 = vld [vmem:[#allocation8 + $0x30] sm:$0xf]
    %v800 = vld [vmem:[#allocation8 + $0x34] sm:$0xf]
    %v801 = vld [vmem:[#allocation8 + $0x38] sm:$0xf]
    %v802 = vld [vmem:[#allocation8 + $0x3c] sm:$0xf]
    %v803 = vld [vmem:[%s6] sm:$0x1]
    %v805 = vlaneseq
    %v806 = vshrl.u32 %v805, 7
    %v807 = vsub.s32 0, %v806
    %v808 = vrot.slane %v803, %v807
    %v826 = vunpack.c.l.b16 %v787
    %v827 = vunpack.c.l.b16 %v788
    %v828 = vunpack.c.l.b16 %v789
    %v829 = vunpack.c.l.b16 %v790
    %v830 = vunpack.c.l.b16 %v791
    %v831 = vunpack.c.l.b16 %v792
    %v832 = vunpack.c.l.b16 %v793
    %v833 = vunpack.c.l.b16 %v794
    %v834 = vunpack.c.l.b16 %v795
    %v835 = vunpack.c.l.b16 %v796
    %v836 = vunpack.c.l.b16 %v797
    %v837 = vunpack.c.l.b16 %v798
    %v838 = vunpack.c.l.b16 %v799
    %v839 = vunpack.c.l.b16 %v800
    %v840 = vunpack.c.l.b16 %v801
    %v841 = vunpack.c.l.b16 %v802
    %v842 = vpack.c.b16 %v827, %v826
    %v843 = vpack.c.b16 %v829, %v828
    %v844 = vpack.c.b16 %v831, %v830
    %v845 = vpack.c.b16 %v833, %v832
    %v846 = vpack.c.b16 %v835, %v834
    %v847 = vpack.c.b16 %v837, %v836
    %v848 = vpack.c.b16 %v839, %v838
    %v849 = vpack.c.b16 %v841, %v840
    %858 = vmatprep.subr.bf16.mxu0 0
    %859 = vmatpush1.bf16.msra.mxu0 %v849
    %860 = vmatprep.subr.bf16.mxu0 0
    %861 = vmatpush1.bf16.msra.mxu0 %v848
    %862 = vmatprep.subr.bf16.mxu0 0
    %863 = vmatpush1.bf16.msra.mxu0 %v847
    %864 = vmatprep.subr.bf16.mxu0 0
    %865 = vmatpush1.bf16.msra.mxu0 %v846
    %866 = vmatprep.subr.bf16.mxu0 0
    %867 = vmatpush1.bf16.msra.mxu0 %v845
    %868 = vmatprep.subr.bf16.mxu0 0
    %869 = vmatpush1.bf16.msra.mxu0 %v844
    %870 = vmatprep.subr.bf16.mxu0 0
    %871 = vmatpush1.bf16.msra.mxu0 %v843
    %872 = vmatprep.subr.bf16.mxu0 0
    %873 = vmatpush1.bf16.msra.mxu0 %v842
    %874 = vmatprep.subr.bf16.mxu0 0
    %875 = vmatpush2.bf16.msra.mxu0 0
    %876 = vmatprep.subr.bf16.mxu0 0
    %877 = vmatpush2.bf16.msra.mxu0 0
    %878 = vmatprep.subr.bf16.mxu0 0
    %879 = vmatpush2.bf16.msra.mxu0 0
    %880 = vmatprep.subr.bf16.mxu0 0
    %881 = vmatpush2.bf16.msra.mxu0 0
    %882 = vmatprep.subr.bf16.mxu0 0
    %883 = vmatpush2.bf16.msra.mxu0 0
    %884 = vmatprep.subr.bf16.mxu0 0
    %885 = vmatpush2.bf16.msra.mxu0 0
    %886 = vmatprep.subr.bf16.mxu0 0
    %887 = vmatpush2.bf16.msra.mxu0 0
    %888 = vmatprep.subr.bf16.mxu0 0
    %889 = vmatpush2.bf16.msra.mxu0 0
    %890 = vmatprep.mubr.bf16.mxu0 0
    %891 = vmatmul.mubr.bf16.gmra.mxu0 %v786
    %v892 = vpop.f32.mrf.mxu0
    %v893 = vadd.f32 %v808, %v892
    %v894 = vpop.f32.mrf.mxu0
    %v895 = vpop.f32.mrf.mxu0
    %v896 = vadd.f32 %v808, %v895
    %v897 = vpop.f32.mrf.mxu0
    %898 = vdwg.mxu0
    %v899 = vmax.f32 %v893, 0.0
    %v900 = vmax.f32 %v896, 0.0
    %v901 = vpack.c.bf16 %v900, %v899
    %v902 = vld [vmem:[#allocation10] sm:$0xf]
    %v903 = vld [vmem:[#allocation10 + $0x4] sm:$0xf]
    %v904 = vld [vmem:[#allocation10 + $0x8] sm:$0xf]
    %v905 = vld [vmem:[#allocation10 + $0xc] sm:$0xf]
    %v906 = vld [vmem:[#allocation10 + $0x10] sm:$0xf]
    %v907 = vld [vmem:[#allocation10 + $0x14] sm:$0xf]
    %v908 = vld [vmem:[#allocation10 + $0x18] sm:$0xf]
    %v909 = vld [vmem:[#allocation10 + $0x1c] sm:$0xf]
    %v910 = vld [vmem:[#allocation10 + $0x20] sm:$0xf]
    %v911 = vld [vmem:[#allocation10 + $0x24] sm:$0xf]
    %v912 = vld [vmem:[#allocation10 + $0x28] sm:$0xf]
    %v913 = vld [vmem:[#allocation10 + $0x2c] sm:$0xf]
    %v914 = vld [vmem:[#allocation10 + $0x30] sm:$0xf]
    %v915 = vld [vmem:[#allocation10 + $0x34] sm:$0xf]
    %v916 = vld [vmem:[#allocation10 + $0x38] sm:$0xf]
    %v917 = vld [vmem:[#allocation10 + $0x3c] sm:$0xf]
    %v918 = vld [vmem:[%s8] sm:$0x1]
    %v920 = vlaneseq
    %v921 = vshrl.u32 %v920, 7
    %v922 = vsub.s32 0, %v921
    %v923 = vrot.slane %v918, %v922
    %v941 = vunpack.c.l.b16 %v902
    %v942 = vunpack.c.l.b16 %v903
    %v943 = vunpack.c.l.b16 %v904
    %v944 = vunpack.c.l.b16 %v905
    %v945 = vunpack.c.l.b16 %v906
    %v946 = vunpack.c.l.b16 %v907
    %v947 = vunpack.c.l.b16 %v908
    %v948 = vunpack.c.l.b16 %v909
    %v949 = vunpack.c.l.b16 %v910
    %v950 = vunpack.c.l.b16 %v911
    %v951 = vunpack.c.l.b16 %v912
    %v952 = vunpack.c.l.b16 %v913
    %v953 = vunpack.c.l.b16 %v914
    %v954 = vunpack.c.l.b16 %v915
    %v955 = vunpack.c.l.b16 %v916
    %v956 = vunpack.c.l.b16 %v917
    %v957 = vpack.c.b16 %v942, %v941
    %v958 = vpack.c.b16 %v944, %v943
    %v959 = vpack.c.b16 %v946, %v945
    %v960 = vpack.c.b16 %v948, %v947
    %v961 = vpack.c.b16 %v950, %v949
    %v962 = vpack.c.b16 %v952, %v951
    %v963 = vpack.c.b16 %v954, %v953
    %v964 = vpack.c.b16 %v956, %v955
    %973 = vmatprep.subr.bf16.mxu0 0
    %974 = vmatpush1.bf16.msra.mxu0 %v964
    %975 = vmatprep.subr.bf16.mxu0 0
    %976 = vmatpush1.bf16.msra.mxu0 %v963
    %977 = vmatprep.subr.bf16.mxu0 0
    %978 = vmatpush1.bf16.msra.mxu0 %v962
    %979 = vmatprep.subr.bf16.mxu0 0
    %980 = vmatpush1.bf16.msra.mxu0 %v961
    %981 = vmatprep.subr.bf16.mxu0 0
    %982 = vmatpush1.bf16.msra.mxu0 %v960
    %983 = vmatprep.subr.bf16.mxu0 0
    %984 = vmatpush1.bf16.msra.mxu0 %v959
    %985 = vmatprep.subr.bf16.mxu0 0
    %986 = vmatpush1.bf16.msra.mxu0 %v958
    %987 = vmatprep.subr.bf16.mxu0 0
    %988 = vmatpush1.bf16.msra.mxu0 %v957
    %989 = vmatprep.subr.bf16.mxu0 0
    %990 = vmatpush2.bf16.msra.mxu0 0
    %991 = vmatprep.subr.bf16.mxu0 0
    %992 = vmatpush2.bf16.msra.mxu0 0
    %993 = vmatprep.subr.bf16.mxu0 0
    %994 = vmatpush2.bf16.msra.mxu0 0
    %995 = vmatprep.subr.bf16.mxu0 0
    %996 = vmatpush2.bf16.msra.mxu0 0
    %997 = vmatprep.subr.bf16.mxu0 0
    %998 = vmatpush2.bf16.msra.mxu0 0
    %999 = vmatprep.subr.bf16.mxu0 0
    %1000 = vmatpush2.bf16.msra.mxu0 0
    %1001 = vmatprep.subr.bf16.mxu0 0
    %1002 = vmatpush2.bf16.msra.mxu0 0
    %1003 = vmatprep.subr.bf16.mxu0 0
    %1004 = vmatpush2.bf16.msra.mxu0 0
    %1005 = vmatprep.mubr.bf16.mxu0 0
    %1006 = vmatmul.mubr.bf16.gmra.mxu0 %v901
    %v1007 = vpop.f32.mrf.mxu0
    %v1008 = vadd.f32 %v923, %v1007
    %v1009 = vpop.f32.mrf.mxu0
    %v1010 = vpop.f32.mrf.mxu0
    %v1011 = vadd.f32 %v923, %v1010
    %v1012 = vpop.f32.mrf.mxu0
    %1013 = vdwg.mxu0
    %v1014 = vmax.f32 %v1008, 0.0
    %v1015 = vmax.f32 %v1011, 0.0
    %v1016 = vpack.c.bf16 %v1015, %v1014
    %v1017 = vld [vmem:[%s9] sm:$0xf]
    %v1018 = vld [vmem:[%s10] sm:$0xff]
    %1020 = vset.pattern.permute.xlu0 0
    %1021 = vperm.xlu0 %1020, %v1018
    %v1022 = vpop.permute.xlu0 %1021
    %1024 = vmatprep.subr.bf16.mxu0 0
    %1025 = vmatpush1.bf16.xpose.msra.mxu0 0
    %1026 = vmatprep.subr.bf16.mxu0 0
    %1027 = vmatpush1.bf16.xpose.msra.mxu0 0
    %1028 = vmatprep.subr.bf16.mxu0 0
    %1029 = vmatpush1.bf16.xpose.msra.mxu0 0
    %1030 = vmatprep.subr.bf16.mxu0 0
    %1031 = vmatpush1.bf16.xpose.msra.mxu0 0
    %1032 = vmatprep.subr.bf16.mxu0 0
    %1033 = vmatpush1.bf16.xpose.msra.mxu0 0
    %1034 = vmatprep.subr.bf16.mxu0 0
    %1035 = vmatpush1.bf16.xpose.msra.mxu0 0
    %1036 = vmatprep.subr.bf16.mxu0 0
    %1037 = vmatpush1.bf16.xpose.msra.mxu0 0
    %1038 = vmatprep.subr.bf16.mxu0 0
    %1039 = vmatpush1.bf16.xpose.msra.mxu0 %v1016
    %1040 = vmatprep.subr.bf16.mxu0 0
    %1041 = vmatpush2.bf16.xpose.msra.mxu0 0
    %1042 = vmatprep.subr.bf16.mxu0 0
    %1043 = vmatpush2.bf16.xpose.msra.mxu0 0
    %1044 = vmatprep.subr.bf16.mxu0 0
    %1045 = vmatpush2.bf16.xpose.msra.mxu0 0
    %1046 = vmatprep.subr.bf16.mxu0 0
    %1047 = vmatpush2.bf16.xpose.msra.mxu0 0
    %1048 = vmatprep.subr.bf16.mxu0 0
    %1049 = vmatpush2.bf16.xpose.msra.mxu0 0
    %1050 = vmatprep.subr.bf16.mxu0 0
    %1051 = vmatpush2.bf16.xpose.msra.mxu0 0
    %1052 = vmatprep.subr.bf16.mxu0 0
    %1053 = vmatpush2.bf16.xpose.msra.mxu0 0
    %1054 = vmatprep.subr.bf16.mxu0 0
    %1055 = vmatpush2.bf16.xpose.msra.mxu0 0
    %1056 = vmatprep.mubr.bf16.mxu0 0
    %1057 = vmatmul.mubr.bf16.gmra.mxu0 %v1017
    %v1058 = vpop.f32.mrf.mxu0
    %v1059 = vadd.f32 %v1022, %v1058
    %v1060 = vpop.f32.mrf.mxu0
    %v1061 = vpop.f32.mrf.mxu0
    %v1062 = vpop.f32.mrf.mxu0
    %1063 = vdwg.mxu0
    %vm1064 = vcmask 130048
    %1065 = vst.msk [vmem:[#allocation11] sm:$0xff] %vm1064, %v1059
    // Predicated region
    $region66: #{_net_forward_padded.1} parent=1 // pred_check
      _
    $region67: #{_net_forward_padded.1} parent=1 // pred_check_branch
      %1067 = sbr.rel (0) target = $region69
    $region68: #{_net_forward_padded.1} parent=1 // pred_region
      %s1069 = ssub.s32 128, 128
      %1070 = vsyncadd [#allocation4], %s1069
      %s1072 = sshll.u32 [#allocation11], 4
      %s1073 = int_to_ptr.vmem [resolvable:$true] %s1072
      %1075 = dma.vmem_to_hbm [thread:$0]  %s1073, 128, %s11, [#allocation4]
    $region69: #{_net_forward_padded.1} parent=1 // pred_fallthru
      _
    // Predicated region
    $region70: #{_net_forward_padded.1} parent=1 // pred_check
      _
    $region71: #{_net_forward_padded.1} parent=1 // pred_check_branch
      %1077 = sbr.rel (0) target = $region73
    $region72: #{_net_forward_padded.1} parent=1 // pred_region
      %1078 = dma.done [#allocation4], 128
    $region73: #{_net_forward_padded.1} parent=1 // pred_fallthru
      _
    %1079 = vsyncpa [#allocation3], 1
    %1080 = vsyncpa [#allocation6], 1
    %1081 = vsyncpa [#allocation9], 1
    %1082 = vsyncpa [#allocation4], 1

</llo_original>
